<compile_context>
chip_gen: v7x
topology: tpu7x:2x2x1
jax: 0.10.0
libtpu: 0.0.40
codegen_flags: <defaults>
</compile_context>

<pallas_src>
import jax
import jax.numpy as jnp
from jax.experimental import pallas as pl
from jax.experimental.pallas import tpu as pltpu


def _round_up(x: int, m: int) -> int:
    return (x + m - 1) // m * m


def _temp_scale_matmul_kernel(temp_ref, x_ref, w_ref, b_ref, o_ref, acc_ref):
    # temp_ref : VMEM (1, 1)    f32   -- scalar temperature
    # x_ref    : VMEM (tm, tk)  bf16  -- flattened-input tile
    # w_ref    : VMEM (tk, tn)  bf16  -- classifier-weight tile
    # b_ref    : VMEM (1, tn)   f32   -- bias tile
    # o_ref    : VMEM (tm, tn)  f32   -- temperature-scaled logits tile
    # acc_ref  : VMEM (tm, tn)  f32   -- accumulator scratch (lives across k)
    k = pl.program_id(2)

    @pl.when(k == 0)
    def _():
        acc_ref[...] = jnp.zeros_like(acc_ref)

    acc_ref[...] += jnp.dot(
        x_ref[...], w_ref[...], preferred_element_type=jnp.float32
    )

    @pl.when(k == pl.num_programs(2) - 1)
    def _():
        inv_t = pl.reciprocal(temp_ref[...], approx=True)  # (1,1), EUP slot
        o_ref[...] = (acc_ref[...] + b_ref[...]) * inv_t


def temperature_scaling_forward(x_nchw, weight, bias, temperature):
    """x_nchw: [B, C, H, W]; weight: [D, K]; bias: [K]; temperature: scalar."""
    B = x_nchw.shape[0]
    D, K = weight.shape
    x_flat = x_nchw.reshape(B, D)

    # --- tile sizes (shape-robust, VMEM-safe on v5e/v6e/v7x) ---
    tm = min(256, _round_up(B, 8))        # sublane-aligned M tile
    tn = min(256, _round_up(K, 128))      # lane-dense N tile (multiple of 128)
    tk = min(512, _round_up(D, 128))      # reduction tile

    Mp = _round_up(B, tm)
    Kp = _round_up(K, tn)
    Dp = _round_up(D, tk)

    # --- padded, bf16 inputs (zero padding is exact for the matmul) ---
    x_bf = jnp.zeros((Mp, Dp), jnp.bfloat16)
    x_bf = x_bf.at[:B, :D].set(x_flat.astype(jnp.bfloat16))
    w_bf = jnp.zeros((Dp, Kp), jnp.bfloat16)
    w_bf = w_bf.at[:D, :K].set(weight.astype(jnp.bfloat16))
    b_f32 = jnp.zeros((1, Kp), jnp.float32)
    b_f32 = b_f32.at[0, :K].set(bias.astype(jnp.float32))
    temp2d = jnp.asarray(temperature, jnp.float32).reshape(1, 1)

    grid = (Mp // tm, Kp // tn, Dp // tk)

    out_padded = pl.pallas_call(
        _temp_scale_matmul_kernel,
        out_shape=jax.ShapeDtypeStruct((Mp, Kp), jnp.float32),
        grid_spec=pltpu.PrefetchScalarGridSpec(
            num_scalar_prefetch=0,
            grid=grid,
            in_specs=[
                pl.BlockSpec((1, 1), lambda i, j, k: (0, 0)),      # temperature
                pl.BlockSpec((tm, tk), lambda i, j, k: (i, k)),    # x tile
                pl.BlockSpec((tk, tn), lambda i, j, k: (k, j)),    # W tile
                pl.BlockSpec((1, tn), lambda i, j, k: (0, j)),     # bias tile
            ],
            out_specs=pl.BlockSpec((tm, tn), lambda i, j, k: (i, j)),
            scratch_shapes=[pltpu.VMEM((tm, tn), jnp.float32)],
        ),
        compiler_params=pltpu.CompilerParams(
            dimension_semantics=("parallel", "parallel", "arbitrary"),
            vmem_limit_bytes=32 * 1024 * 1024,
        ),
        cost_estimate=pl.CostEstimate(
            flops=2 * Mp * Dp * Kp,
            transcendentals=0,
            bytes_accessed=(Mp * Dp * 2) + (Dp * Kp * 2) + (Kp * 4) + (Mp * Kp * 4),
        ),
    )(temp2d, x_bf, w_bf, b_f32)

    return out_padded[:B, :K]


if __name__ == "__main__":
    # Small shapes consistent with the module's forward: NCHW image batch.
    B, C, H, W = 2, 4, 16, 16
    K = 10                      # number of classes
    D = C * H * W

    key = jax.random.PRNGKey(0)
    kx, kw, kb = jax.random.split(key, 3)

    x = jax.random.normal(kx, (B, C, H, W), dtype=jnp.float32)
    # Deterministic "model" parameters (synthetic linear classifier).
    weight = jax.random.normal(kw, (D, K), dtype=jnp.float32) * 0.02
    bias = jax.random.normal(kb, (K,), dtype=jnp.float32) * 0.1
    temperature = jnp.float32(1.5)   # nn.Parameter(torch.ones(1) * 1.5)

    out = temperature_scaling_forward(x, weight, bias, temperature)
    jax.block_until_ready(out)

    # Reference check in plain JAX (same semantics as the PyTorch forward).
    # Tolerance is loosened for bf16 matmul inputs + approx reciprocal.
    ref = (x.reshape(B, D) @ weight + bias) / temperature
    assert out.shape == (B, K)
    assert jnp.allclose(out, ref, atol=3e-2, rtol=3e-2), "mismatch vs reference"

    print("KERNEL_OK")
</pallas_src>

<mosaic_0001>
module attributes {stable_mosaic.version = 11 : i64} {
  func.func @_temp_scale_matmul_kernel(%arg0: i32, %arg1: i32, %arg2: i32, %arg3: memref<1x1xf32, #tpu.memory_space<vmem>>, %arg4: memref<8x512xbf16, #tpu.memory_space<vmem>>, %arg5: memref<512x128xbf16, #tpu.memory_space<vmem>>, %arg6: memref<1x128xf32, #tpu.memory_space<vmem>>, %arg7: memref<8x128xf32, #tpu.memory_space<vmem>>, %arg8: memref<8x128xf32, #tpu.memory_space<vmem>>) attributes {dimension_semantics = [#tpu.dimension_semantics<parallel>, #tpu.dimension_semantics<parallel>, #tpu.dimension_semantics<arbitrary>], iteration_bounds = array<i64: 1, 1, 2>, scalar_prefetch = 0 : i64, scratch_operands = 1 : i64, tpu.core_type = #tpu.core_type<tc>, window_params = [{pipeline_mode = #tpu.pipeline_mode<synchronous>, transform_indices = @transform_0, window_bounds = array<i64: 1, 1>}, {transform_indices = @transform_1, window_bounds = array<i64: 8, 512>}, {transform_indices = @transform_2, window_bounds = array<i64: 512, 128>}, {transform_indices = @transform_3, window_bounds = array<i64: 1, 128>}, {transform_indices = @transform_4, window_bounds = array<i64: 8, 128>}]} {
    %c0_i32 = arith.constant 0 : i32
    %0 = arith.cmpi eq, %arg2, %c0_i32 : i32
    %1 = arith.extui %0 : i1 to i32
    %c0_i32_0 = arith.constant 0 : i32
    %2 = arith.cmpi ne, %1, %c0_i32_0 : i32
    scf.if %2 {
      %cst_9 = arith.constant 0.000000e+00 : f32
      %12 = vector.broadcast %cst_9 : f32 to vector<8x128xf32>
      %c0_10 = arith.constant 0 : index
      %c0_11 = arith.constant 0 : index
      %13 = vector.load %arg8[%c0_10, %c0_11] : memref<8x128xf32, #tpu.memory_space<vmem>>, vector<8x128xf32>
      tpu.vector_store %arg8[%c0_10, %c0_11], %12 {strides = array<i32>} : memref<8x128xf32, #tpu.memory_space<vmem>>, vector<8x128xf32>,
    } else {
    }
    %c0 = arith.constant 0 : index
    %c0_1 = arith.constant 0 : index
    %3 = vector.load %arg8[%c0, %c0_1] : memref<8x128xf32, #tpu.memory_space<vmem>>, vector<8x128xf32>
    %c0_2 = arith.constant 0 : index
    %c0_3 = arith.constant 0 : index
    %4 = vector.load %arg4[%c0_2, %c0_3] : memref<8x512xbf16, #tpu.memory_space<vmem>>, vector<8x512xbf16>
    %c0_4 = arith.constant 0 : index
    %c0_5 = arith.constant 0 : index
    %5 = vector.load %arg5[%c0_4, %c0_5] : memref<512x128xbf16, #tpu.memory_space<vmem>>, vector<512x128xbf16>
    %cst = arith.constant dense<0.000000e+00> : vector<8x128xf32>
    %6 = tpu.matmul %4, %5, %cst {dimension_numbers = #tpu.dot_dimension_numbers<[1], [0], [0], [1], [0, 0, 1, 1], [], []>} : vector<8x512xbf16>, vector<512x128xbf16>, vector<8x128xf32> -> vector<8x128xf32>
    %7 = arith.addf %3, %6 : vector<8x128xf32>
    %c0_6 = arith.constant 0 : index
    %c0_7 = arith.constant 0 : index
    %8 = vector.load %arg8[%c0_6, %c0_7] : memref<8x128xf32, #tpu.memory_space<vmem>>, vector<8x128xf32>
    tpu.vector_store %arg8[%c0_6, %c0_7], %7 {strides = array<i32>} : memref<8x128xf32, #tpu.memory_space<vmem>>, vector<8x128xf32>,
    %c1_i32 = arith.constant 1 : i32
    %9 = arith.cmpi eq, %arg2, %c1_i32 : i32
    %10 = arith.extui %9 : i1 to i32
    %c0_i32_8 = arith.constant 0 : i32
    %11 = arith.cmpi ne, %10, %c0_i32_8 : i32
    scf.if %11 {
      %c0_9 = arith.constant 0 : index
      %c0_10 = arith.constant 0 : index
      %12 = vector.load %arg3[%c0_9, %c0_10] : memref<1x1xf32, #tpu.memory_space<vmem>>, vector<1x1xf32>
      %13 = tpu.reciprocal %12 {approx = true} : vector<1x1xf32> -> vector<1x1xf32>
      %c0_11 = arith.constant 0 : index
      %c0_12 = arith.constant 0 : index
      %14 = vector.load %arg8[%c0_11, %c0_12] : memref<8x128xf32, #tpu.memory_space<vmem>>, vector<8x128xf32>
      %c0_13 = arith.constant 0 : index
      %c0_14 = arith.constant 0 : index
      %15 = vector.load %arg6[%c0_13, %c0_14] : memref<1x128xf32, #tpu.memory_space<vmem>>, vector<1x128xf32>
      %16 = vector.broadcast %15 : vector<1x128xf32> to vector<8x128xf32>
      %17 = arith.addf %14, %16 : vector<8x128xf32>
      %18 = vector.broadcast %13 : vector<1x1xf32> to vector<8x128xf32>
      %19 = arith.mulf %17, %18 : vector<8x128xf32>
      %c0_15 = arith.constant 0 : index
      %c0_16 = arith.constant 0 : index
      %20 = vector.load %arg7[%c0_15, %c0_16] : memref<8x128xf32, #tpu.memory_space<vmem>>, vector<8x128xf32>
      tpu.vector_store %arg7[%c0_15, %c0_16], %19 {strides = array<i32>} : memref<8x128xf32, #tpu.memory_space<vmem>>, vector<8x128xf32>,
    } else {
    }
    return
  }
  func.func @transform_0(%arg0: i32, %arg1: i32, %arg2: i32) -> (i32, i32) {
    %c0_i32 = arith.constant 0 : i32
    %c0_i32_0 = arith.constant 0 : i32
    %c0_i32_1 = arith.constant 0 : i32
    return %c0_i32, %c0_i32_0 : i32, i32
  }
  func.func @transform_1(%arg0: i32, %arg1: i32, %arg2: i32) -> (i32, i32) {
    %c0_i32 = arith.constant 0 : i32
    return %arg0, %arg2 : i32, i32
  }
  func.func @transform_2(%arg0: i32, %arg1: i32, %arg2: i32) -> (i32, i32) {
    %c0_i32 = arith.constant 0 : i32
    return %arg2, %arg1 : i32, i32
  }
  func.func @transform_3(%arg0: i32, %arg1: i32, %arg2: i32) -> (i32, i32) {
    %c0_i32 = arith.constant 0 : i32
    %c0_i32_0 = arith.constant 0 : i32
    return %c0_i32, %arg1 : i32, i32
  }
  func.func @transform_4(%arg0: i32, %arg1: i32, %arg2: i32) -> (i32, i32) {
    %c0_i32 = arith.constant 0 : i32
    return %arg0, %arg1 : i32, i32
  }
}

</mosaic_0001>

<llo_original>
// kernel: tpu_custom_call.1
$region0: #{tpu_custom_call.1}
  #allocation0 [shape = 'u32[]', space=smem, size = 0x4, offset = 0x4, fixed_abs, tag = 'smem constant byte address 0x4 - core index']
  #allocation1 [shape = 'u32[144,128]{1,0:T(1,128)}', space=vmem, size = 0x12000, scoped, tag = 'internal scratch']
  #allocation2 [shape = 'f32[8,128]{1,0:T(8,128)}', space=vmem, size = 0x1000, scoped, tag = 'scratch operand']
  #allocation3 [shape = 'f32[1,1]{1,0:T(1,128)S(1)}', space=vmem, size = 0x200, scoped, tag = 'scoped memory for tpu_custom_call.1']
  %s0 = inlined_call_operand.<no memory space> [shape: f32[1,1], index: 0, kind: input, shape index: {}]
  %s1 = inlined_call_operand.hbm [shape: bf16[8,1024], index: 1, kind: input, shape index: {}]
  %s2 = inlined_call_operand.hbm [shape: bf16[1024,128], index: 2, kind: input, shape index: {}]
  %s3 = inlined_call_operand.vmem [shape: f32[1,128], index: 3, kind: input, shape index: {}]
  %s4 = inlined_call_operand.hbm [shape: f32[8,128], index: 4, kind: output, shape index: {}]
  %s5 = sld [smem:[#allocation0]]
  $region65: #{tpu_custom_call.1} parent=0
    _
  %s7 = ssub.s32 1, %s5
  %s8 = scalar_select 0, %s7, %s5
  %v9 = vstv %s0
  %10 = vst [vmem:[#allocation3] sm:$0x1] %v9
  $region1: #{tpu_custom_call.1} parent=0
    #allocation4 [shape = 'u8[16384]{0}', space=vmem, size = 0x4000, scoped, tag = 'input window, operand 1']
    #allocation5 [shape = 's32[2]{0}', space=sflag, size = 0x8, scoped, tag = 'scoped memory for tpu_custom_call.1']
    #allocation6 [shape = 's32[2]{0}', space=sflag, size = 0x8, scoped, tag = 'scoped memory for tpu_custom_call.1']
    #allocation7 [shape = 'u8[262144]{0}', space=vmem, size = 0x40000, scoped, tag = 'input window, operand 2']
    #allocation8 [shape = 's32[2]{0}', space=sflag, size = 0x8, scoped, tag = 'scoped memory for tpu_custom_call.1']
    #allocation9 [shape = 'u8[4096]{0}', space=vmem, size = 0x1000, scoped, tag = 'output window, operand 0, single buffered']
    %11 = vsyncpa [#allocation5], 0
    %s12 = scalar_lea.sflag [#allocation5], 1
    %13 = vsyncpa %s12, 0
    %14 = vsyncpa [#allocation8], 0
    %s15 = scalar_lea.sflag [#allocation8], 1
    %16 = vsyncpa %s15, 0
    %17 = vsyncpa [#allocation6], 0
    loop: start=0, step=1, limit=4
    $region2: #{tpu_custom_call.1} parent=1 // loop_pre_header
      _
    $region3: #{tpu_custom_call.1} parent=1 // loop_header
      %s19 = sphi 0, %s23
      %p20 = scmp.ge.s32.totalorder %s19, 4
      %s26 = sphi 0, %s45
      %s27 = sphi 0, %s41
      %s28 = sphi 0, %s37
      %s29 = sphi 0, %s26
      %s30 = sphi 0, %s27
      %s31 = sphi 0, %s28
      %s32 = sphi 0, %s29
      %s33 = sphi 0, %s30
      %s34 = sphi 0, %s31
      %s46 = sphi 0, %s46
      %s48 = sphi 0, %s46
      %s49 = sphi 0, %s48
      %s63 = sphi 0, %s49
      %s71 = sphi 0, %s73
      %s74 = sphi 0, %s71
      %s75 = sphi 0, %s74
      %s91 = sphi 0, %s75
      %s99 = sphi 0, %s101
      %s102 = sphi 0, %s99
      %s103 = sphi 0, %s102
      %s119 = sphi 0, %s103
      %s125 = sphi 0, %s127
      %s128 = sphi 0, %s125
      %s129 = sphi 0, %s128
      %s145 = sphi 0, %s129
      %s153 = sphi 0, %s155
      %s156 = sphi 0, %s153
      %s157 = sphi 0, %s156
      %s173 = sphi 0, %s157
    $region4: #{tpu_custom_call.1} parent=1 // loop_header_branch
      %22 = sbr.rel (%p20) target = $region8
    $region5: #{tpu_custom_call.1} parent=1 // loop_body
      %s24 = ssub.s32 %s19, 1
      %s25 = ssub.s32 %s19, 2
      %s35 = sadd.s32 1, %s28
      %p36 = scmp.ge.s32.totalorder %s35, 2
      %s37 = scalar_select %p36, 0, %s35
      %s38 = sadd.s32 1, %s27
      %s39 = scalar_select %p36, %s38, %s27
      %p40 = scmp.ge.s32.totalorder %s39, 1
      %s41 = scalar_select %p40, 0, %s39
      %s42 = sadd.s32 1, %s26
      %s43 = scalar_select %p40, %s42, %s26
      %p44 = scmp.ge.s32.totalorder %s43, 1
      %s45 = scalar_select %p44, 0, %s43
      %s47 = sadd.s32 %s46, 1
      %p50 = scmp.eq.s32.totalorder %s19, 1
      %p51 = scmp.ne.s32.totalorder %s46, %s48
      %p52 = scmp.eq.s32.totalorder %s19, 0
      %p53 = por %p51, %p52
      %p54 = scmp.ne.s32.totalorder %s46, %s48
      %p55 = scmp.eq.s32.totalorder %s24, 1
      %p56 = por %p54, %p55
      %p57 = scmp.ne.s32.totalorder %s48, %s49
      %p58 = scmp.eq.s32.totalorder %s24, 0
      %p59 = por %p57, %p58
      %p60 = scmp.ne.s32.totalorder %s48, %s49
      %p61 = scmp.eq.s32.totalorder %s25, 1
      %p62 = por %p60, %p61
      %p64 = scmp.ne.s32.totalorder %s49, %s63
      %p65 = scmp.eq.s32.totalorder %s25, 0
      %p66 = por %p64, %p65
      %s67 = ssub.s32 %s26, %s45
      %s68 = ssub.s32 %s28, %s37
      %s69 = sor.u32 %s67, %s68
      %p70 = scmp.eq.s32.totalorder %s69, 0
      %s72 = sadd.s32 %s71, 1
      %s73 = scalar_select %p70, %s71, %s72
      %p76 = pneg %p70
      %p77 = scmp.eq.s32.totalorder %s19, 1
      %p78 = por %p76, %p77
      %p79 = scmp.ne.s32.totalorder %s71, %s74
      %p80 = scmp.eq.s32.totalorder %s19, 0
      %p81 = por %p79, %p80
      %p82 = scmp.ne.s32.totalorder %s71, %s74
      %p83 = scmp.eq.s32.totalorder %s24, 1
      %p84 = por %p82, %p83
      %p85 = scmp.ne.s32.totalorder %s74, %s75
      %p86 = scmp.eq.s32.totalorder %s24, 0
      %p87 = por %p85, %p86
      %p88 = scmp.ne.s32.totalorder %s74, %s75
      %p89 = scmp.eq.s32.totalorder %s25, 1
      %p90 = por %p88, %p89
      %p92 = scmp.ne.s32.totalorder %s75, %s91
      %p93 = scmp.eq.s32.totalorder %s25, 0
      %p94 = por %p92, %p93
      %s95 = ssub.s32 %s28, %s37
      %s96 = ssub.s32 %s27, %s41
      %s97 = sor.u32 %s95, %s96
      %p98 = scmp.eq.s32.totalorder %s97, 0
      %s100 = sadd.s32 %s99, 1
      %s101 = scalar_select %p98, %s99, %s100
      %p104 = pneg %p98
      %p105 = scmp.eq.s32.totalorder %s19, 1
      %p106 = por %p104, %p105
      %p107 = scmp.ne.s32.totalorder %s99, %s102
      %p108 = scmp.eq.s32.totalorder %s19, 0
      %p109 = por %p107, %p108
      %p110 = scmp.ne.s32.totalorder %s99, %s102
      %p111 = scmp.eq.s32.totalorder %s24, 1
      %p112 = por %p110, %p111
      %p113 = scmp.ne.s32.totalorder %s102, %s103
      %p114 = scmp.eq.s32.totalorder %s24, 0
      %p115 = por %p113, %p114
      %p116 = scmp.ne.s32.totalorder %s102, %s103
      %p117 = scmp.eq.s32.totalorder %s25, 1
      %p118 = por %p116, %p117
      %p120 = scmp.ne.s32.totalorder %s103, %s119
      %p121 = scmp.eq.s32.totalorder %s25, 0
      %p122 = por %p120, %p121
      %s123 = ssub.s32 %s27, %s41
      %p124 = scmp.eq.s32.totalorder %s123, 0
      %s126 = sadd.s32 %s125, 1
      %s127 = scalar_select %p124, %s125, %s126
      %p130 = pneg %p124
      %p131 = scmp.eq.s32.totalorder %s19, 1
      %p132 = por %p130, %p131
      %p133 = scmp.ne.s32.totalorder %s125, %s128
      %p134 = scmp.eq.s32.totalorder %s19, 0
      %p135 = por %p133, %p134
      %p136 = scmp.ne.s32.totalorder %s125, %s128
      %p137 = scmp.eq.s32.totalorder %s24, 1
      %p138 = por %p136, %p137
      %p139 = scmp.ne.s32.totalorder %s128, %s129
      %p140 = scmp.eq.s32.totalorder %s24, 0
      %p141 = por %p139, %p140
      %p142 = scmp.ne.s32.totalorder %s128, %s129
      %p143 = scmp.eq.s32.totalorder %s25, 1
      %p144 = por %p142, %p143
      %p146 = scmp.ne.s32.totalorder %s129, %s145
      %p147 = scmp.eq.s32.totalorder %s25, 0
      %p148 = por %p146, %p147
      %s149 = ssub.s32 %s26, %s45
      %s150 = ssub.s32 %s27, %s41
      %s151 = sor.u32 %s149, %s150
      %p152 = scmp.eq.s32.totalorder %s151, 0
      %s154 = sadd.s32 %s153, 1
      %s155 = scalar_select %p152, %s153, %s154
      %p158 = pneg %p152
      %p159 = scmp.eq.s32.totalorder %s19, 1
      %p160 = por %p158, %p159
      %p161 = scmp.ne.s32.totalorder %s153, %s156
      %p162 = scmp.eq.s32.totalorder %s19, 0
      %p163 = por %p161, %p162
      %p164 = scmp.ne.s32.totalorder %s153, %s156
      %p165 = scmp.eq.s32.totalorder %s24, 1
      %p166 = por %p164, %p165
      %p167 = scmp.ne.s32.totalorder %s156, %s157
      %p168 = scmp.eq.s32.totalorder %s24, 0
      %p169 = por %p167, %p168
      %p170 = scmp.ne.s32.totalorder %s156, %s157
      %p171 = scmp.eq.s32.totalorder %s25, 1
      %p172 = por %p170, %p171
      %p174 = scmp.ne.s32.totalorder %s157, %s173
      %p175 = scmp.eq.s32.totalorder %s25, 0
      %p176 = por %p174, %p175
      %p177 = scmp.le.s32.totalorder 1, %s19
      %p178 = scmp.lt.s32.totalorder %s19, 3
      %p179 = pnand %p177, %p178
      %p180 = pneg %p179
      // Predicated region
      $region9: #{tpu_custom_call.1} parent=5 // pred_check
        _
      $region10: #{tpu_custom_call.1} parent=5 // pred_check_branch
        %182 = sbr.rel (%p179) target = $region12
      $region11: #{tpu_custom_call.1} parent=5 // pred_region
        %s183 = ssub.s32 %s19, 1
        // Predicated region
        $region13: #{tpu_custom_call.1} parent=11 // pred_check
          %p184 = pneg %p59
        $region14: #{tpu_custom_call.1} parent=11 // pred_check_branch
          %186 = sbr.rel (%p184) target = $region16
        $region15: #{tpu_custom_call.1} parent=11 // pred_region
          _
        $region16: #{tpu_custom_call.1} parent=11 // pred_fallthru
          _
        // Predicated region
        $region17: #{tpu_custom_call.1} parent=11 // pred_check
          %p187 = pneg %p141
        $region18: #{tpu_custom_call.1} parent=11 // pred_check_branch
          %189 = sbr.rel (%p187) target = $region20
        $region19: #{tpu_custom_call.1} parent=11 // pred_region
          %p190 = scmp.lt.s32.totalorder %s30, 0
          %s191 = scalar_select %p190, %s30, 0
          %s192 = scalar_lea.vmem %s3, %s191
        $region20: #{tpu_custom_call.1} parent=11 // pred_fallthru
          _
      $region12: #{tpu_custom_call.1} parent=5 // pred_fallthru
        _
      %p193 = scmp.lt.s32.totalorder %s19, 2
      // Predicated region
      $region21: #{tpu_custom_call.1} parent=5 // pred_check
        %p194 = pneg %p193
      $region22: #{tpu_custom_call.1} parent=5 // pred_check_branch
        %196 = sbr.rel (%p194) target = $region24
      $region23: #{tpu_custom_call.1} parent=5 // pred_region
        // Predicated region
        $region25: #{tpu_custom_call.1} parent=23 // pred_check
          %p197 = pneg %p81
        $region26: #{tpu_custom_call.1} parent=23 // pred_check_branch
          %199 = sbr.rel (%p197) target = $region28
        $region27: #{tpu_custom_call.1} parent=23 // pred_region
          %s200 = sand.u32 %s71, 1
          %s201 = scalar_lea.sflag [#allocation5], %s200
          %s202 = sand.u32 %s71, 1
          %s203 = smul.addr %s202, 16
          %s204 = scalar_lea.vmem [#allocation4], %s203
          %s205 = smul.u32 4, %s28
          %s207 = ssub.s32 256, 256
          %208 = vsyncadd %s201, %s207
          %s209 = smul.addr %s26, 8
          %s210 = sadd.s32 %s205, %s209
          %s211 = smul.addr %s210, 64
          %s212 = scalar_lea.hbm %s1, %s211
          %s214 = sshll.u32 %s204, 4
          %s215 = int_to_ptr.vmem [resolvable:$true] %s214
          %217 = dma.hbm_to_vmem [thread:$0]  %s212, 256, %s215, %s201
        $region28: #{tpu_custom_call.1} parent=23 // pred_fallthru
          _
        // Predicated region
        $region29: #{tpu_custom_call.1} parent=23 // pred_check
          %p218 = pneg %p109
        $region30: #{tpu_custom_call.1} parent=23 // pred_check_branch
          %220 = sbr.rel (%p218) target = $region32
        $region31: #{tpu_custom_call.1} parent=23 // pred_region
          %s221 = sand.u32 %s99, 1
          %s222 = scalar_lea.sflag [#allocation8], %s221
          %s223 = sand.u32 %s99, 1
          %s224 = smul.addr %s223, 256
          %s225 = scalar_lea.vmem [#allocation7], %s224
          %s226 = smul.u32 64, %s28
          %s228 = ssub.s32 4096, 4096
          %229 = vsyncadd %s222, %s228
          %s230 = sadd.s32 %s27, %s226
          %s231 = smul.addr %s230, 64
          %s232 = scalar_lea.hbm %s2, %s231
          %s233 = sshll.u32 %s225, 4
          %s234 = int_to_ptr.vmem [resolvable:$true] %s233
          %239 = dma.hbm_to_vmem [thread:$0]  %s232, 4096, %s234, %s222, 64, 64, 4
        $region32: #{tpu_custom_call.1} parent=23 // pred_fallthru
          _
      $region24: #{tpu_custom_call.1} parent=5 // pred_fallthru
        _
      %p240 = scmp.le.s32.totalorder 1, %s19
      %p241 = scmp.lt.s32.totalorder %s19, 3
      %p242 = pnand %p240, %p241
      %p243 = pneg %p242
      // Predicated region
      $region33: #{tpu_custom_call.1} parent=5 // pred_check
        _
      $region34: #{tpu_custom_call.1} parent=5 // pred_check_branch
        %245 = sbr.rel (%p242) target = $region36
      $region35: #{tpu_custom_call.1} parent=5 // pred_region
        %s246 = ssub.s32 %s19, 1
        %s247 = sand.u32 %s74, 1
        %s248 = scalar_lea.sflag [#allocation5], %s247
        %s249 = sand.u32 %s74, 1
        %s250 = smul.addr %s249, 16
        %s251 = scalar_lea.vmem [#allocation4], %s250
        // Predicated region
        $region37: #{tpu_custom_call.1} parent=35 // pred_check
          %p252 = pneg %p87
        $region38: #{tpu_custom_call.1} parent=35 // pred_check_branch
          %254 = sbr.rel (%p252) target = $region40
        $region39: #{tpu_custom_call.1} parent=35 // pred_region
          %255 = dma.done %s248, 256
        $region40: #{tpu_custom_call.1} parent=35 // pred_fallthru
          _
        %s256 = sand.u32 %s102, 1
        %s257 = scalar_lea.sflag [#allocation8], %s256
        %s258 = sand.u32 %s102, 1
        %s259 = smul.addr %s258, 256
        %s260 = scalar_lea.vmem [#allocation7], %s259
        // Predicated region
        $region41: #{tpu_custom_call.1} parent=35 // pred_check
          %p261 = pneg %p115
        $region42: #{tpu_custom_call.1} parent=35 // pred_check_branch
          %263 = sbr.rel (%p261) target = $region44
        $region43: #{tpu_custom_call.1} parent=35 // pred_region
          %264 = dma.done %s257, 4096
        $region44: #{tpu_custom_call.1} parent=35 // pred_fallthru
          _
        %p265 = pneg %p59
        %p266 = pneg %p56
        %s267 = sand.u32 %s74, 1
        %s268 = scalar_lea.sflag [#allocation5], %s267
        %s269 = sand.u32 %s74, 1
        %s270 = smul.addr %s269, 16
        %s271 = scalar_lea.vmem [#allocation4], %s270
        %p272 = pneg %p87
        %p273 = pneg %p84
        %s274 = sand.u32 %s102, 1
        %s275 = scalar_lea.sflag [#allocation8], %s274
        %s276 = sand.u32 %s102, 1
        %s277 = smul.addr %s276, 256
        %s278 = scalar_lea.vmem [#allocation7], %s277
        %p279 = pneg %p115
        %p280 = pneg %p112
        %p281 = scmp.lt.s32.totalorder %s30, 0
        %s282 = scalar_select %p281, %s30, 0
        %s283 = scalar_lea.vmem %s3, %s282
        %p284 = pneg %p141
        %p285 = pneg %p138
        %p286 = pneg %p169
        %p287 = pneg %p166
        %s288 = smul.u32 4, %s31
        %s289 = smul.u32 64, %s31
        %p290 = scmp.lt.s32.totalorder %s30, 0
        %s291 = scalar_select %p290, %s30, 0
        %s292 = scalar_lea.vmem %s3, %s291
        %p294 = scmp.eq.s32.totalorder %s31, 0
        // Predicated region
        $region45: #{tpu_custom_call.1} parent=35 // pred_check
          %p295 = pneg %p294
        $region46: #{tpu_custom_call.1} parent=35 // pred_check_branch
          %297 = sbr.rel (%p295) target = $region48
        $region47: #{tpu_custom_call.1} parent=35 // pred_region
          %298 = vst [vmem:[#allocation2] sm:$0xff] 0.0
        $region48: #{tpu_custom_call.1} parent=35 // pred_fallthru
          _
        %v299 = vld [vmem:[#allocation2] sm:$0xff]
        %v300 = vld [vmem:[%s251] sm:$0xff]
        %v301 = vld [vmem:[%s251 + $0x8] sm:$0xff]
        %v302 = vld [vmem:[%s260] sm:$0xf]
        %v303 = vld [vmem:[%s260 + $0x4] sm:$0xf]
        %v304 = vld [vmem:[%s260 + $0x8] sm:$0xf]
        %v305 = vld [vmem:[%s260 + $0xc] sm:$0xf]
        %v306 = vld [vmem:[%s260 + $0x10] sm:$0xf]
        %v307 = vld [vmem:[%s260 + $0x14] sm:$0xf]
        %v308 = vld [vmem:[%s260 + $0x18] sm:$0xf]
        %v309 = vld [vmem:[%s260 + $0x1c] sm:$0xf]
        %v310 = vld [vmem:[%s260 + $0x20] sm:$0xf]
        %v311 = vld [vmem:[%s260 + $0x24] sm:$0xf]
        %v312 = vld [vmem:[%s260 + $0x28] sm:$0xf]
        %v313 = vld [vmem:[%s260 + $0x2c] sm:$0xf]
        %v314 = vld [vmem:[%s260 + $0x30] sm:$0xf]
        %v315 = vld [vmem:[%s260 + $0x34] sm:$0xf]
        %v316 = vld [vmem:[%s260 + $0x38] sm:$0xf]
        %v317 = vld [vmem:[%s260 + $0x3c] sm:$0xf]
        %v318 = vld [vmem:[%s260 + $0x40] sm:$0xf]
        %v319 = vld [vmem:[%s260 + $0x44] sm:$0xf]
        %v320 = vld [vmem:[%s260 + $0x48] sm:$0xf]
        %v321 = vld [vmem:[%s260 + $0x4c] sm:$0xf]
        %v322 = vld [vmem:[%s260 + $0x50] sm:$0xf]
        %v323 = vld [vmem:[%s260 + $0x54] sm:$0xf]
        %v324 = vld [vmem:[%s260 + $0x58] sm:$0xf]
        %v325 = vld [vmem:[%s260 + $0x5c] sm:$0xf]
        %v326 = vld [vmem:[%s260 + $0x60] sm:$0xf]
        %v327 = vld [vmem:[%s260 + $0x64] sm:$0xf]
        %v328 = vld [vmem:[%s260 + $0x68] sm:$0xf]
        %v329 = vld [vmem:[%s260 + $0x6c] sm:$0xf]
        %v330 = vld [vmem:[%s260 + $0x70] sm:$0xf]
        %v331 = vld [vmem:[%s260 + $0x74] sm:$0xf]
        %v332 = vld [vmem:[%s260 + $0x78] sm:$0xf]
        %v333 = vld [vmem:[%s260 + $0x7c] sm:$0xf]
        %v334 = vld [vmem:[%s260 + $0x80] sm:$0xf]
        %v335 = vld [vmem:[%s260 + $0x84] sm:$0xf]
        %v336 = vld [vmem:[%s260 + $0x88] sm:$0xf]
        %v337 = vld [vmem:[%s260 + $0x8c] sm:$0xf]
        %v338 = vld [vmem:[%s260 + $0x90] sm:$0xf]
        %v339 = vld [vmem:[%s260 + $0x94] sm:$0xf]
        %v340 = vld [vmem:[%s260 + $0x98] sm:$0xf]
        %v341 = vld [vmem:[%s260 + $0x9c] sm:$0xf]
        %v342 = vld [vmem:[%s260 + $0xa0] sm:$0xf]
        %v343 = vld [vmem:[%s260 + $0xa4] sm:$0xf]
        %v344 = vld [vmem:[%s260 + $0xa8] sm:$0xf]
        %v345 = vld [vmem:[%s260 + $0xac] sm:$0xf]
        %v346 = vld [vmem:[%s260 + $0xb0] sm:$0xf]
        %v347 = vld [vmem:[%s260 + $0xb4] sm:$0xf]
        %v348 = vld [vmem:[%s260 + $0xb8] sm:$0xf]
        %v349 = vld [vmem:[%s260 + $0xbc] sm:$0xf]
        %v350 = vld [vmem:[%s260 + $0xc0] sm:$0xf]
        %v351 = vld [vmem:[%s260 + $0xc4] sm:$0xf]
        %v352 = vld [vmem:[%s260 + $0xc8] sm:$0xf]
        %v353 = vld [vmem:[%s260 + $0xcc] sm:$0xf]
        %v354 = vld [vmem:[%s260 + $0xd0] sm:$0xf]
        %v355 = vld [vmem:[%s260 + $0xd4] sm:$0xf]
        %v356 = vld [vmem:[%s260 + $0xd8] sm:$0xf]
        %v357 = vld [vmem:[%s260 + $0xdc] sm:$0xf]
        %v358 = vld [vmem:[%s260 + $0xe0] sm:$0xf]
        %v359 = vld [vmem:[%s260 + $0xe4] sm:$0xf]
        %v360 = vld [vmem:[%s260 + $0xe8] sm:$0xf]
        %v361 = vld [vmem:[%s260 + $0xec] sm:$0xf]
        %v362 = vld [vmem:[%s260 + $0xf0] sm:$0xf]
        %v363 = vld [vmem:[%s260 + $0xf4] sm:$0xf]
        %v364 = vld [vmem:[%s260 + $0xf8] sm:$0xf]
        %v365 = vld [vmem:[%s260 + $0xfc] sm:$0xf]
        %v368 = vunpack.c.l.b16 %v300
        %v369 = vunpack.c.h.b16 %v300
        %v370 = vunpack.c.l.b16 %v301
        %v371 = vunpack.c.h.b16 %v301
        %v372 = vpack.c.b16 %v368, %v368
        %v373 = vpack.c.b16 %v369, %v369
        %v374 = vpack.c.b16 %v370, %v370
        %v375 = vpack.c.b16 %v371, %v371
        %v444 = vunpack.c.l.b16 %v302
        %v445 = vunpack.c.l.b16 %v303
        %v446 = vunpack.c.l.b16 %v304
        %v447 = vunpack.c.l.b16 %v305
        %v448 = vunpack.c.l.b16 %v306
        %v449 = vunpack.c.l.b16 %v307
        %v450 = vunpack.c.l.b16 %v308
        %v451 = vunpack.c.l.b16 %v309
        %v452 = vunpack.c.l.b16 %v310
        %v453 = vunpack.c.l.b16 %v311
        %v454 = vunpack.c.l.b16 %v312
        %v455 = vunpack.c.l.b16 %v313
        %v456 = vunpack.c.l.b16 %v314
        %v457 = vunpack.c.l.b16 %v315
        %v458 = vunpack.c.l.b16 %v316
        %v459 = vunpack.c.l.b16 %v317
        %v460 = vunpack.c.l.b16 %v318
        %v461 = vunpack.c.l.b16 %v319
        %v462 = vunpack.c.l.b16 %v320
        %v463 = vunpack.c.l.b16 %v321
        %v464 = vunpack.c.l.b16 %v322
        %v465 = vunpack.c.l.b16 %v323
        %v466 = vunpack.c.l.b16 %v324
        %v467 = vunpack.c.l.b16 %v325
        %v468 = vunpack.c.l.b16 %v326
        %v469 = vunpack.c.l.b16 %v327
        %v470 = vunpack.c.l.b16 %v328
        %v471 = vunpack.c.l.b16 %v329
        %v472 = vunpack.c.l.b16 %v330
        %v473 = vunpack.c.l.b16 %v331
        %v474 = vunpack.c.l.b16 %v332
        %v475 = vunpack.c.l.b16 %v333
        %v476 = vunpack.c.l.b16 %v334
        %v477 = vunpack.c.l.b16 %v335
        %v478 = vunpack.c.l.b16 %v336
        %v479 = vunpack.c.l.b16 %v337
        %v480 = vunpack.c.l.b16 %v338
        %v481 = vunpack.c.l.b16 %v339
        %v482 = vunpack.c.l.b16 %v340
        %v483 = vunpack.c.l.b16 %v341
        %v484 = vunpack.c.l.b16 %v342
        %v485 = vunpack.c.l.b16 %v343
        %v486 = vunpack.c.l.b16 %v344
        %v487 = vunpack.c.l.b16 %v345
        %v488 = vunpack.c.l.b16 %v346
        %v489 = vunpack.c.l.b16 %v347
        %v490 = vunpack.c.l.b16 %v348
        %v491 = vunpack.c.l.b16 %v349
        %v492 = vunpack.c.l.b16 %v350
        %v493 = vunpack.c.l.b16 %v351
        %v494 = vunpack.c.l.b16 %v352
        %v495 = vunpack.c.l.b16 %v353
        %v496 = vunpack.c.l.b16 %v354
        %v497 = vunpack.c.l.b16 %v355
        %v498 = vunpack.c.l.b16 %v356
        %v499 = vunpack.c.l.b16 %v357
        %v500 = vunpack.c.l.b16 %v358
        %v501 = vunpack.c.l.b16 %v359
        %v502 = vunpack.c.l.b16 %v360
        %v503 = vunpack.c.l.b16 %v361
        %v504 = vunpack.c.l.b16 %v362
        %v505 = vunpack.c.l.b16 %v363
        %v506 = vunpack.c.l.b16 %v364
        %v507 = vunpack.c.l.b16 %v365
        %v508 = vpack.c.b16 %v445, %v444
        %v509 = vpack.c.b16 %v447, %v446
        %v510 = vpack.c.b16 %v449, %v448
        %v511 = vpack.c.b16 %v451, %v450
        %v512 = vpack.c.b16 %v453, %v452
        %v513 = vpack.c.b16 %v455, %v454
        %v514 = vpack.c.b16 %v457, %v456
        %v515 = vpack.c.b16 %v459, %v458
        %v516 = vpack.c.b16 %v461, %v460
        %v517 = vpack.c.b16 %v463, %v462
        %v518 = vpack.c.b16 %v465, %v464
        %v519 = vpack.c.b16 %v467, %v466
        %v520 = vpack.c.b16 %v469, %v468
        %v521 = vpack.c.b16 %v471, %v470
        %v522 = vpack.c.b16 %v473, %v472
        %v523 = vpack.c.b16 %v475, %v474
        %v524 = vpack.c.b16 %v477, %v476
        %v525 = vpack.c.b16 %v479, %v478
        %v526 = vpack.c.b16 %v481, %v480
        %v527 = vpack.c.b16 %v483, %v482
        %v528 = vpack.c.b16 %v485, %v484
        %v529 = vpack.c.b16 %v487, %v486
        %v530 = vpack.c.b16 %v489, %v488
        %v531 = vpack.c.b16 %v491, %v490
        %v532 = vpack.c.b16 %v493, %v492
        %v533 = vpack.c.b16 %v495, %v494
        %v534 = vpack.c.b16 %v497, %v496
        %v535 = vpack.c.b16 %v499, %v498
        %v536 = vpack.c.b16 %v501, %v500
        %v537 = vpack.c.b16 %v503, %v502
        %v538 = vpack.c.b16 %v505, %v504
        %v539 = vpack.c.b16 %v507, %v506
        %572 = vmatprep.subr.bf16.mxu0 0
        %573 = vmatpush1.bf16.msra.mxu0 %v508
        %574 = vmatprep.subr.bf16.mxu0 0
        %575 = vmatpush1.bf16.msra.mxu0 %v509
        %576 = vmatprep.subr.bf16.mxu0 0
        %577 = vmatpush1.bf16.msra.mxu0 %v510
        %578 = vmatprep.subr.bf16.mxu0 0
        %579 = vmatpush1.bf16.msra.mxu0 %v511
        %580 = vmatprep.subr.bf16.mxu0 0
        %581 = vmatpush1.bf16.msra.mxu0 %v512
        %582 = vmatprep.subr.bf16.mxu0 0
        %583 = vmatpush1.bf16.msra.mxu0 %v513
        %584 = vmatprep.subr.bf16.mxu0 0
        %585 = vmatpush1.bf16.msra.mxu0 %v514
        %586 = vmatprep.subr.bf16.mxu0 0
        %587 = vmatpush1.bf16.msra.mxu0 %v515
        %588 = vmatprep.subr.bf16.mxu0 0
        %589 = vmatpush1.bf16.msra.mxu0 %v516
        %590 = vmatprep.subr.bf16.mxu0 0
        %591 = vmatpush1.bf16.msra.mxu0 %v517
        %592 = vmatprep.subr.bf16.mxu0 0
        %593 = vmatpush1.bf16.msra.mxu0 %v518
        %594 = vmatprep.subr.bf16.mxu0 0
        %595 = vmatpush1.bf16.msra.mxu0 %v519
        %596 = vmatprep.subr.bf16.mxu0 0
        %597 = vmatpush1.bf16.msra.mxu0 %v520
        %598 = vmatprep.subr.bf16.mxu0 0
        %599 = vmatpush1.bf16.msra.mxu0 %v521
        %600 = vmatprep.subr.bf16.mxu0 0
        %601 = vmatpush1.bf16.msra.mxu0 %v522
        %602 = vmatprep.subr.bf16.mxu0 0
        %603 = vmatpush1.bf16.msra.mxu0 %v523
        %604 = vmatprep.mubr.bf16.mxu0 %v373
        %605 = vmatmul.mubr.bf16.gmra.mrb[0].mxu0 %v372
        %v606 = vpop.f32.mrb[0].mxu0
        %v607 = vadd.f32 0.0, %v606
        %v608 = vpop.f32.mrb[0].mxu0
        %v609 = vpop.f32.mrb[0].mxu0
        %v610 = vpop.f32.mrb[0].mxu0
        %611 = vdwg.mxu0
        %612 = vmatprep.subr.bf16.mxu0 0
        %613 = vmatpush1.bf16.msra.mxu0 %v524
        %614 = vmatprep.subr.bf16.mxu0 0
        %615 = vmatpush1.bf16.msra.mxu0 %v525
        %616 = vmatprep.subr.bf16.mxu0 0
        %617 = vmatpush1.bf16.msra.mxu0 %v526
        %618 = vmatprep.subr.bf16.mxu0 0
        %619 = vmatpush1.bf16.msra.mxu0 %v527
        %620 = vmatprep.subr.bf16.mxu0 0
        %621 = vmatpush1.bf16.msra.mxu0 %v528
        %622 = vmatprep.subr.bf16.mxu0 0
        %623 = vmatpush1.bf16.msra.mxu0 %v529
        %624 = vmatprep.subr.bf16.mxu0 0
        %625 = vmatpush1.bf16.msra.mxu0 %v530
        %626 = vmatprep.subr.bf16.mxu0 0
        %627 = vmatpush1.bf16.msra.mxu0 %v531
        %628 = vmatprep.subr.bf16.mxu0 0
        %629 = vmatpush1.bf16.msra.mxu0 %v532
        %630 = vmatprep.subr.bf16.mxu0 0
        %631 = vmatpush1.bf16.msra.mxu0 %v533
        %632 = vmatprep.subr.bf16.mxu0 0
        %633 = vmatpush1.bf16.msra.mxu0 %v534
        %634 = vmatprep.subr.bf16.mxu0 0
        %635 = vmatpush1.bf16.msra.mxu0 %v535
        %636 = vmatprep.subr.bf16.mxu0 0
        %637 = vmatpush1.bf16.msra.mxu0 %v536
        %638 = vmatprep.subr.bf16.mxu0 0
        %639 = vmatpush1.bf16.msra.mxu0 %v537
        %640 = vmatprep.subr.bf16.mxu0 0
        %641 = vmatpush1.bf16.msra.mxu0 %v538
        %642 = vmatprep.subr.bf16.mxu0 0
        %643 = vmatpush1.bf16.msra.mxu0 %v539
        %644 = vmatprep.mubr.bf16.mxu0 %v375
        %645 = vmatmul.mubr.bf16.gmra.mrb[0].mxu0 %v374
        %v646 = vpop.f32.mrb[0].mxu0
        %v647 = vadd.f32 %v607, %v646
        %v648 = vpop.f32.mrb[0].mxu0
        %v649 = vpop.f32.mrb[0].mxu0
        %v650 = vpop.f32.mrb[0].mxu0
        %651 = vdwg.mxu0
        %v652 = vadd.f32 %v299, %v647
        %653 = vst [vmem:[#allocation2] sm:$0xff] %v652
        %p654 = scmp.eq.s32.totalorder %s31, 1
        // Predicated region
        $region49: #{tpu_custom_call.1} parent=35 // pred_check
          %p655 = pneg %p654
        $region50: #{tpu_custom_call.1} parent=35 // pred_check_branch
          %657 = sbr.rel (%p655) target = $region52
        $region51: #{tpu_custom_call.1} parent=35 // pred_region
          %v658 = vld [vmem:[#allocation3] sm:$0x1]
          %v659 = vrcp.pop %v658
          %v660 = vld [vmem:[#allocation2] sm:$0xff]
          %v661 = vld [vmem:[%s292] sm:$0x1]
          %v663 = vlaneseq
          %v664 = vshrl.u32 %v663, 7
          %v665 = vsub.s32 0, %v664
          %v666 = vrot.slane %v661, %v665
          %v668 = vadd.f32 %v660, %v666
          %v670 = vlaneseq
          %v671 = vshrl.u32 %v670, 7
          %v672 = vsub.s32 0, %v671
          %v673 = vrot.slane %v659, %v672
          %674 = vset.pattern.permute.xlu0 0
          %675 = vperm.xlu0 %674, %v673
          %v676 = vpop.permute.xlu0 %675
          %v678 = vmul.f32 %v668, %v676
          %679 = vst [vmem:[#allocation9] sm:$0xff] %v678
        $region52: #{tpu_custom_call.1} parent=35 // pred_fallthru
          _
        // Predicated region
        $region53: #{tpu_custom_call.1} parent=35 // pred_check
          %p680 = pneg %p166
        $region54: #{tpu_custom_call.1} parent=35 // pred_check_branch
          %682 = sbr.rel (%p680) target = $region56
        $region55: #{tpu_custom_call.1} parent=35 // pred_region
          %s684 = ssub.s32 128, 128
          %685 = vsyncadd [#allocation6], %s684
          %s686 = sadd.s32 %s30, %s29
          %s687 = smul.addr %s686, 128
          %s688 = scalar_lea.hbm %s4, %s687
          %s690 = sshll.u32 [#allocation9], 4
          %s691 = int_to_ptr.vmem [resolvable:$true] %s690
          %693 = dma.vmem_to_hbm [thread:$0]  %s691, 128, %s688, [#allocation6]
        $region56: #{tpu_custom_call.1} parent=35 // pred_fallthru
          _
        // Predicated region
        $region57: #{tpu_custom_call.1} parent=35 // pred_check
          %p694 = pneg %p166
        $region58: #{tpu_custom_call.1} parent=35 // pred_check_branch
          %696 = sbr.rel (%p694) target = $region60
        $region59: #{tpu_custom_call.1} parent=35 // pred_region
          %697 = dma.done [#allocation6], 128
        $region60: #{tpu_custom_call.1} parent=35 // pred_fallthru
          _
      $region36: #{tpu_custom_call.1} parent=5 // pred_fallthru
        _
      %p698 = scmp.le.s32.totalorder 2, %s19
      // Predicated region
      $region61: #{tpu_custom_call.1} parent=5 // pred_check
        %p699 = pneg %p698
      $region62: #{tpu_custom_call.1} parent=5 // pred_check_branch
        %701 = sbr.rel (%p699) target = $region64
      $region63: #{tpu_custom_call.1} parent=5 // pred_region
        %s702 = ssub.s32 %s19, 2
      $region64: #{tpu_custom_call.1} parent=5 // pred_fallthru
        _
    $region6: #{tpu_custom_call.1} parent=1 // loop_footer
      %s23 = sadd.s32 1, %s19
    $region7: #{tpu_custom_call.1} parent=1 // loop_footer_branch
      %18 = sbr.rel target = $region3
    $region8: #{tpu_custom_call.1} parent=1 // loop_exit
      _
    %703 = vsyncpa [#allocation5], 1
    %s704 = scalar_lea.sflag [#allocation5], 1
    %705 = vsyncpa %s704, 1
    %706 = vsyncpa [#allocation8], 1
    %s707 = scalar_lea.sflag [#allocation8], 1
    %708 = vsyncpa %s707, 1
    %709 = vsyncpa [#allocation6], 1
    %s710 = scalar_lea.sflag [#allocation6], 1
    %711 = vsyncpa %s710, 1

</llo_original>
